<compile_context>
chip_gen: v6e
topology: v6e:2x2x1
jax: 0.10.0
libtpu: 0.0.40
codegen_flags: <defaults>
</compile_context>

<pallas_src>
import jax
import jax.numpy as jnp
import numpy as np
from jax import lax
from jax.experimental import pallas as pl
from jax.experimental.pallas import tpu as pltpu


def _round_up(n, m):
    return ((n + m - 1) // m) * m


def _choose_tile_bp(bp, t_pad):
    """(b,p)-rows per grid step.

    Target 2048-4096 MXU rows per step (per-step fixed overhead ~0.35us
    dominates below that).  When there is enough total work, split into a small
    EVEN number of balanced blocks so v7x can shard the 'parallel' grid axis
    across its two TensorCores; otherwise use a single step (best on 1-TC
    v5e/v6e and for small problems)."""
    MIN_ROWS, MAX_ROWS = 2048, 4096
    bp8 = _round_up(bp, 8)
    if bp8 * t_pad < 2 * MIN_ROWS:
        return bp8                        # single step -- minimal fixed overhead
    nblk = 2
    while True:
        tile_bp = _round_up(-(-bp8 // nblk), 8)
        if tile_bp * t_pad <= MAX_ROWS or tile_bp == 8:
            return tile_bp
        nblk += 2


# ----------------------------------------------------------------------------
# Pallas kernel: rotation net with the first layer's c/y contributions hoisted
# and layers 3+4 fused offline.
#   base_ref  : (tile_bp, H1)   f32  = c@W1[:C] + y_joint@W1[C:C+6] + b1
#   theta_ref : (tile_bp, Tp)   f32  theta channel per (b,p,t)
#   wt_ref    : (1, H1)         f32  W1 row of the theta feature
#   w2_ref    : (H1, H2)        compute dtype (bf16 default)
#   b2_ref    : (1, H2)         f32
#   w34_ref   : (8, H2)         compute dtype; row 0 = (W3@W4)^T, rows 1-7 zero
#   b34_ref   : (1, 1)          f32  = b3@W4 + b4
#   o_ref     : (1, 1, tile_bp*Tp) f32  lane-dense output slab
# ----------------------------------------------------------------------------
def _rotation_net_kernel(base_ref, theta_ref, wt_ref, w2_ref, b2_ref,
                         w34_ref, b34_ref, o_ref):
    tile_bp, h1 = base_ref.shape
    t = theta_ref.shape[1]
    rows = tile_bp * t
    cdt = w2_ref.dtype

    # Layer 1 == relu(x @ W1 + b1) with the c_joint / y_joint parts folded into
    # `base` (shared across all T); only the rank-1 theta term is evaluated
    # here (VPU broadcast-mul-add -- no MXU, no (C+7)-wide stream).
    wt = wt_ref[...].reshape(1, 1, h1)                              # (1,1,H1)
    h = base_ref[...][:, None, :] + theta_ref[...][:, :, None] * wt
    # Tp % 8 == 0 and H1 % 128 == 0 (checked in the wrapper) -> free reshape.
    h = jnp.maximum(h, 0.0).reshape(rows, h1)

    # Layer 2 on the MXU (low-precision inputs, f32 accumulation).
    h = jnp.dot(h.astype(cdt), w2_ref[...],
                preferred_element_type=jnp.float32) + b2_ref[...]
    h = jnp.maximum(h, 0.0)

    # Fused layers 3+4: contract H2 with the result landing on the LANE axis
    # -> (8, rows); only row 0 carries data (rows 1-7 of w34 are zero padding).
    o8 = lax.dot_general(
        w34_ref[...], h.astype(cdt),
        dimension_numbers=(((1,), (1,)), ((), ())),
        preferred_element_type=jnp.float32)                         # (8, rows)
    o = o8[0:1, :] + b34_ref[...]                                   # (1, rows)
    o_ref[...] = o.reshape(1, 1, rows).astype(o_ref.dtype)


def rotation_net_forward(base, theta_chan, w1_theta, w2, b2, w3, b3, w4, b4,
                         *, compute_dtype=jnp.bfloat16, use_pallas=None):
    """base: (BP, H1) f32, theta_chan: (BP, T) f32, w1_theta: (H1,) f32.
    Returns (BP, T) f32."""
    BP, H1 = base.shape
    T = theta_chan.shape[1]
    H2 = w2.shape[1]

    # Offline fusion of layers 3-4 (no nonlinearity between them): pure algebra.
    w34_row = (w3 @ w4).reshape(1, H2)             # (1, H2)  == (W3@W4)^T
    b34 = b3 @ w4 + b4                             # (1, 1)

    Tp = _round_up(T, 8)

    if use_pallas is None:
        # Tiny problems: pallas_call launch + pipeline warm-up exceeds the whole
        # compute; let XLA fuse the already-hoisted formulation.
        use_pallas = BP * Tp >= 2048
    if H1 % 128 != 0:
        use_pallas = False   # in-kernel free reshape assumes lane-aligned H1

    def _xla_path():
        h = jnp.maximum(
            base[:, None, :] + theta_chan[:, :, None] * w1_theta[None, None, :],
            0.0)
        h = jnp.maximum(jnp.einsum('bth,hk->btk', h, w2) + b2, 0.0)
        return jnp.einsum('bth,h->bt', h, w34_row[0]) + b34[0, 0]

    if not use_pallas:
        return _xla_path()

    tile_bp = _choose_tile_bp(BP, Tp)
    rows = tile_bp * Tp
    # VMEM guard: per-step (rows, 128) f32+bf16 activations are ~1.75 KB/row.
    if rows * 2048 > 24 * 1024 * 1024:
        return _xla_path()

    BPp = _round_up(BP, tile_bp)
    nblk = BPp // tile_bp

    base_p = jnp.pad(base, ((0, BPp - BP), (0, 0)))                 # (BPp, H1)
    theta_p = jnp.pad(theta_chan, ((0, BPp - BP), (0, Tp - T)))     # (BPp, Tp)
    wt = w1_theta.reshape(1, H1).astype(jnp.float32)

    w2c = w2.astype(compute_dtype)
    # Pad the fused weight row to 8 sublanes (rows 1-7 zero) for a clean MXU op.
    w34_8 = jnp.zeros((8, H2), compute_dtype).at[0].set(
        w34_row[0].astype(compute_dtype))

    const2 = lambda i: (0, 0)

    out = pl.pallas_call(
        _rotation_net_kernel,
        out_shape=jax.ShapeDtypeStruct((nblk, 1, rows), jnp.float32),
        grid_spec=pltpu.PrefetchScalarGridSpec(
            num_scalar_prefetch=0,
            grid=(nblk,),
            in_specs=[
                pl.BlockSpec((tile_bp, H1), lambda i: (i, 0)),   # base
                pl.BlockSpec((tile_bp, Tp), lambda i: (i, 0)),   # theta channel
                pl.BlockSpec((1, H1), const2),                   # W1 theta row
                pl.BlockSpec((H1, H2), const2),                  # W2
                pl.BlockSpec((1, H2), const2),                   # b2
                pl.BlockSpec((8, H2), const2),                   # (W3@W4)^T padded
                pl.BlockSpec((1, 1), const2),                    # b34
            ],
            out_specs=pl.BlockSpec((1, 1, rows), lambda i: (i, 0, 0)),
        ),
        compiler_params=pltpu.CompilerParams(
            dimension_semantics=("parallel",),
            vmem_limit_bytes=32 * 1024 * 1024),
    )(base_p, theta_p, wt, w2c, b2, w34_8, b34)

    return out.reshape(BPp, Tp)[:BP, :T]


# ----------------------------------------------------------------------------
# Joint_decoder forward
# ----------------------------------------------------------------------------
def joint_decoder_forward(c_joint, theta, joint_params, rot_params, num_p,
                          compute_dtype=jnp.bfloat16, use_pallas=None):
    """
    c_joint: (B, C)   theta: (B, T, P-1)
    returns: trans (B,P,3), axis (B,P,3), rotation (B,P,T)
    """
    B, C = c_joint.shape
    T = theta.shape[1]
    P = num_p

    jw1, jb1, jw2, jb2, jw3, jb3, jw4, jb4 = joint_params
    rw1, rb1, rw2, rb2, rw3, rb3, rw4, rb4 = rot_params

    # joint_net on (B, C): B is a small batch, so a dedicated pallas_call would
    # be pure launch/DMA overhead -- XLA runs it and fuses it with the split-W1
    # hoist below.
    h = jnp.maximum(c_joint @ jw1 + jb1, 0.0)
    h = jnp.maximum(h @ jw2 + jb2, 0.0)
    h = h @ jw3 + jb3
    y_joint = (h @ jw4 + jb4).reshape(B, P, 6)
    y_trans = y_joint[:, :, :3]
    y_axis = y_joint[:, :, 3:]

    # Split-W1 hoist: the rotation-net input per (b,p,t) is
    # [c_joint[b] | y_joint[b,p] | theta_chan[b,p,t]]; its W1 product splits
    # into per-b and per-(b,p) parts shared across all T (and P) steps.
    h_c = c_joint @ rw1[:C]                                      # (B, H1)
    h_y = jnp.einsum('bpj,jh->bph', y_joint, rw1[C:C + 6])       # (B, P, H1)
    base = (h_c[:, None, :] + h_y + rb1).reshape(B * P, -1)      # (BP, H1), incl. b1

    theta_chan = jnp.concatenate(
        [jnp.transpose(theta, (0, 2, 1)),
         jnp.zeros((B, 1, T), theta.dtype)], axis=1).reshape(B * P, T)

    y_rotation = rotation_net_forward(
        base, theta_chan, rw1[C + 6], rw2, rb2, rw3, rb3, rw4, rb4,
        compute_dtype=compute_dtype, use_pallas=use_pallas).reshape(B, P, T)

    return y_trans, y_axis, y_rotation


# ----------------------------------------------------------------------------
# Pure-JAX reference (mirrors the PyTorch module exactly) for verification
# ----------------------------------------------------------------------------
def _mlp4_ref(x, params):
    w1, b1, w2, b2, w3, b3, w4, b4 = params
    h = jnp.maximum(x @ w1 + b1, 0.0)
    h = jnp.maximum(h @ w2 + b2, 0.0)
    h = h @ w3 + b3
    return h @ w4 + b4


def joint_decoder_ref(c_joint, theta, joint_params, rot_params, num_p):
    B, C = c_joint.shape
    T = theta.shape[1]
    P = num_p
    y_joint = _mlp4_ref(c_joint, joint_params).reshape(B, P, 6)
    y_trans, y_axis = y_joint[:, :, :3], y_joint[:, :, 3:]
    theta_perm = jnp.transpose(theta, (0, 2, 1))[..., None]
    theta_full = jnp.concatenate(
        [theta_perm, jnp.zeros((B, 1, T, 1), theta.dtype)], axis=1)
    inp = jnp.concatenate(
        [jnp.broadcast_to(c_joint[:, None, None, :], (B, P, T, C)),
         jnp.broadcast_to(y_joint[:, :, None, :], (B, P, T, 6)),
         theta_full], axis=-1).reshape(B * P * T, C + 7)
    y_rot = _mlp4_ref(inp, rot_params).reshape(B, P, T)
    return y_trans, y_axis, y_rot


# ----------------------------------------------------------------------------
# Deterministic parameter init (PyTorch nn.Linear-style uniform bounds)
# ----------------------------------------------------------------------------
def _linear_params(key, fan_in, fan_out):
    kw, kb = jax.random.split(key)
    bound = 1.0 / np.sqrt(fan_in)
    w = jax.random.uniform(kw, (fan_in, fan_out), jnp.float32, -bound, bound)
    b = jax.random.uniform(kb, (1, fan_out), jnp.float32, -bound, bound)
    return w, b


def _make_mlp_params(key, dims):
    params = []
    keys = jax.random.split(key, len(dims) - 1)
    for k, din, dout in zip(keys, dims[:-1], dims[1:]):
        w, b = _linear_params(k, din, dout)
        params.extend([w, b])
    return tuple(params)


if __name__ == "__main__":
    fwd = jax.jit(joint_decoder_forward,
                  static_argnames=("num_p", "compute_dtype", "use_pallas"))

    # ---- small shapes (B, C, T, P) consistent with the module forward -------
    B, C, T, P = 2, 32, 8, 4
    key = jax.random.PRNGKey(0)
    k_c, k_t, k_j, k_r = jax.random.split(key, 4)

    c_joint = jax.random.normal(k_c, (B, C), dtype=jnp.float32)
    theta = jax.random.normal(k_t, (B, T, P - 1), dtype=jnp.float32)
    joint_params = _make_mlp_params(k_j, (C, 128, 128, 64, 6 * P))
    rot_params = _make_mlp_params(k_r, (C + 7, 128, 128, 64, 1))

    trans_r, axis_r, rot_r = joint_decoder_ref(
        c_joint, theta, joint_params, rot_params, P)

    # 1) Pallas path forced on (exercise the kernel), f32 compute: tight check.
    trans, axis, rotation = fwd(c_joint, theta, joint_params, rot_params,
                                num_p=P, compute_dtype=jnp.float32,
                                use_pallas=True)
    jax.block_until_ready((trans, axis, rotation))
    np.testing.assert_allclose(np.asarray(trans), np.asarray(trans_r),
                               rtol=2e-4, atol=2e-4)
    np.testing.assert_allclose(np.asarray(axis), np.asarray(axis_r),
                               rtol=2e-4, atol=2e-4)
    np.testing.assert_allclose(np.asarray(rotation), np.asarray(rot_r),
                               rtol=2e-4, atol=2e-4)
    assert trans.shape == (B, P, 3)
    assert axis.shape == (B, P, 3)
    assert rotation.shape == (B, P, T)

    # 2) Default bf16-MXU-input path through the kernel: loose check.
    _, _, rot_b = fwd(c_joint, theta, joint_params, rot_params,
                      num_p=P, compute_dtype=jnp.bfloat16, use_pallas=True)
    jax.block_until_ready(rot_b)
    np.testing.assert_allclose(np.asarray(rot_b), np.asarray(rot_r),
                               rtol=5e-2, atol=5e-2)

    # 3) Auto gating at tiny size (XLA fallback path): tight check.
    trans_a, axis_a, rot_a = fwd(c_joint, theta, joint_params, rot_params,
                                 num_p=P, compute_dtype=jnp.float32,
                                 use_pallas=None)
    jax.block_until_ready(rot_a)
    np.testing.assert_allclose(np.asarray(rot_a), np.asarray(rot_r),
                               rtol=2e-4, atol=2e-4)

    # ---- medium shape: exercises the balanced 2-block grid + T/BP padding ---
    B2, C2, T2, P2 = 3, 32, 77, 18          # BP=54 -> 2 blocks of tile_bp=32
    k_c2, k_t2, k_j2, k_r2 = jax.random.split(jax.random.PRNGKey(1), 4)
    c_joint2 = jax.random.normal(k_c2, (B2, C2), dtype=jnp.float32)
    theta2 = jax.random.normal(k_t2, (B2, T2, P2 - 1), dtype=jnp.float32)
    joint_params2 = _make_mlp_params(k_j2, (C2, 128, 128, 64, 6 * P2))
    rot_params2 = _make_mlp_params(k_r2, (C2 + 7, 128, 128, 64, 1))

    trans2, axis2, rot2 = fwd(c_joint2, theta2, joint_params2, rot_params2,
                              num_p=P2, compute_dtype=jnp.float32,
                              use_pallas=None)   # auto -> Pallas at this size
    jax.block_until_ready((trans2, axis2, rot2))
    trans2_r, axis2_r, rot2_r = joint_decoder_ref(
        c_joint2, theta2, joint_params2, rot_params2, P2)
    np.testing.assert_allclose(np.asarray(trans2), np.asarray(trans2_r),
                               rtol=2e-4, atol=2e-4)
    np.testing.assert_allclose(np.asarray(axis2), np.asarray(axis2_r),
                               rtol=2e-4, atol=2e-4)
    np.testing.assert_allclose(np.asarray(rot2), np.asarray(rot2_r),
                               rtol=2e-4, atol=2e-4)
    assert rot2.shape == (B2, P2, T2)

    print("KERNEL_OK")
</pallas_src>

<mosaic_0001>
module attributes {stable_mosaic.version = 11 : i64} {
  func.func @_rotation_net_kernel(%arg0: i32, %arg1: memref<8x128xf32, #tpu.memory_space<vmem>>, %arg2: memref<8x8xf32, #tpu.memory_space<vmem>>, %arg3: memref<1x128xf32, #tpu.memory_space<vmem>>, %arg4: memref<128x128xf32, #tpu.memory_space<vmem>>, %arg5: memref<1x128xf32, #tpu.memory_space<vmem>>, %arg6: memref<8x128xf32, #tpu.memory_space<vmem>>, %arg7: memref<1x1xf32, #tpu.memory_space<vmem>>, %arg8: memref<1x1x64xf32, #tpu.memory_space<vmem>>) attributes {dimension_semantics = [#tpu.dimension_semantics<parallel>], iteration_bounds = array<i64: 1>, scalar_prefetch = 0 : i64, scratch_operands = 0 : i64, tpu.core_type = #tpu.core_type<tc>, window_params = [{transform_indices = @transform_0, window_bounds = array<i64: 8, 128>}, {transform_indices = @transform_1, window_bounds = array<i64: 8, 8>}, {pipeline_mode = #tpu.pipeline_mode<synchronous>, transform_indices = @transform_2, window_bounds = array<i64: 1, 128>}, {pipeline_mode = #tpu.pipeline_mode<synchronous>, transform_indices = @transform_3, window_bounds = array<i64: 128, 128>}, {pipeline_mode = #tpu.pipeline_mode<synchronous>, transform_indices = @transform_4, window_bounds = array<i64: 1, 128>}, {pipeline_mode = #tpu.pipeline_mode<synchronous>, transform_indices = @transform_5, window_bounds = array<i64: 8, 128>}, {pipeline_mode = #tpu.pipeline_mode<synchronous>, transform_indices = @transform_6, window_bounds = array<i64: 1, 1>}, {transform_indices = @transform_7, window_bounds = array<i64: 1, 1, 64>}]} {
    %c0 = arith.constant 0 : index
    %c0_0 = arith.constant 0 : index
    %0 = vector.load %arg3[%c0, %c0_0] : memref<1x128xf32, #tpu.memory_space<vmem>>, vector<1x128xf32>
    %1 = vector.shape_cast %0 : vector<1x128xf32> to vector<1x1x128xf32>
    %c0_1 = arith.constant 0 : index
    %c0_2 = arith.constant 0 : index
    %2 = vector.load %arg1[%c0_1, %c0_2] : memref<8x128xf32, #tpu.memory_space<vmem>>, vector<8x128xf32>
    %3 = vector.shape_cast %2 : vector<8x128xf32> to vector<8x1x128xf32>
    %c0_3 = arith.constant 0 : index
    %c0_4 = arith.constant 0 : index
    %4 = vector.load %arg2[%c0_3, %c0_4] : memref<8x8xf32, #tpu.memory_space<vmem>>, vector<8x8xf32>
    %5 = vector.shape_cast %4 : vector<8x8xf32> to vector<8x8x1xf32>
    %6 = vector.broadcast %5 : vector<8x8x1xf32> to vector<8x8x128xf32>
    %7 = vector.broadcast %1 : vector<1x1x128xf32> to vector<8x8x128xf32>
    %8 = arith.mulf %6, %7 : vector<8x8x128xf32>
    %9 = vector.broadcast %3 : vector<8x1x128xf32> to vector<8x8x128xf32>
    %10 = arith.addf %9, %8 : vector<8x8x128xf32>
    %cst = arith.constant 0.000000e+00 : f32
    %11 = vector.broadcast %cst : f32 to vector<8x8x128xf32>
    %12 = arith.maximumf %10, %11 : vector<8x8x128xf32>
    %13 = vector.shape_cast %12 : vector<8x8x128xf32> to vector<64x128xf32>
    %c0_5 = arith.constant 0 : index
    %c0_6 = arith.constant 0 : index
    %14 = vector.load %arg4[%c0_5, %c0_6] : memref<128x128xf32, #tpu.memory_space<vmem>>, vector<128x128xf32>
    %cst_7 = arith.constant dense<0.000000e+00> : vector<64x128xf32>
    %15 = tpu.matmul %13, %14, %cst_7 {dimension_numbers = #tpu.dot_dimension_numbers<[1], [0], [0], [1], [0, 0, 1, 1], [], []>} : vector<64x128xf32>, vector<128x128xf32>, vector<64x128xf32> -> vector<64x128xf32>
    %c0_8 = arith.constant 0 : index
    %c0_9 = arith.constant 0 : index
    %16 = vector.load %arg5[%c0_8, %c0_9] : memref<1x128xf32, #tpu.memory_space<vmem>>, vector<1x128xf32>
    %17 = vector.broadcast %16 : vector<1x128xf32> to vector<64x128xf32>
    %18 = arith.addf %15, %17 : vector<64x128xf32>
    %cst_10 = arith.constant 0.000000e+00 : f32
    %19 = vector.broadcast %cst_10 : f32 to vector<64x128xf32>
    %20 = arith.maximumf %18, %19 : vector<64x128xf32>
    %c0_11 = arith.constant 0 : index
    %c0_12 = arith.constant 0 : index
    %21 = vector.load %arg6[%c0_11, %c0_12] : memref<8x128xf32, #tpu.memory_space<vmem>>, vector<8x128xf32>
    %cst_13 = arith.constant dense<0.000000e+00> : vector<8x64xf32>
    %22 = tpu.matmul %21, %20, %cst_13 {dimension_numbers = #tpu.dot_dimension_numbers<[1], [1], [0], [0], [0, 0, 1, 0], [], []>} : vector<8x128xf32>, vector<64x128xf32>, vector<8x64xf32> -> vector<8x64xf32>
    %23 = vector.extract_strided_slice %22 {offsets = [0, 0], sizes = [1, 64], strides = [1, 1]} : vector<8x64xf32> to vector<1x64xf32>
    %c0_14 = arith.constant 0 : index
    %c0_15 = arith.constant 0 : index
    %24 = vector.load %arg7[%c0_14, %c0_15] : memref<1x1xf32, #tpu.memory_space<vmem>>, vector<1x1xf32>
    %25 = vector.broadcast %24 : vector<1x1xf32> to vector<1x64xf32>
    %26 = arith.addf %23, %25 : vector<1x64xf32>
    %27 = vector.shape_cast %26 : vector<1x64xf32> to vector<1x1x64xf32>
    %c0_16 = arith.constant 0 : index
    %c0_17 = arith.constant 0 : index
    %c0_18 = arith.constant 0 : index
    %28 = vector.load %arg8[%c0_16, %c0_17, %c0_18] : memref<1x1x64xf32, #tpu.memory_space<vmem>>, vector<1x1x64xf32>
    tpu.vector_store %arg8[%c0_16, %c0_17, %c0_18], %27 {strides = array<i32>} : memref<1x1x64xf32, #tpu.memory_space<vmem>>, vector<1x1x64xf32>,
    return
  }
  func.func @transform_0(%arg0: i32) -> (i32, i32) {
    %c0_i32 = arith.constant 0 : i32
    %c0_i32_0 = arith.constant 0 : i32
    return %arg0, %c0_i32 : i32, i32
  }
  func.func @transform_1(%arg0: i32) -> (i32, i32) {
    %c0_i32 = arith.constant 0 : i32
    %c0_i32_0 = arith.constant 0 : i32
    return %arg0, %c0_i32 : i32, i32
  }
  func.func @transform_2(%arg0: i32) -> (i32, i32) {
    %c0_i32 = arith.constant 0 : i32
    %c0_i32_0 = arith.constant 0 : i32
    %c0_i32_1 = arith.constant 0 : i32
    return %c0_i32, %c0_i32_0 : i32, i32
  }
  func.func @transform_3(%arg0: i32) -> (i32, i32) {
    %c0_i32 = arith.constant 0 : i32
    %c0_i32_0 = arith.constant 0 : i32
    %c0_i32_1 = arith.constant 0 : i32
    return %c0_i32, %c0_i32_0 : i32, i32
  }
  func.func @transform_4(%arg0: i32) -> (i32, i32) {
    %c0_i32 = arith.constant 0 : i32
    %c0_i32_0 = arith.constant 0 : i32
    %c0_i32_1 = arith.constant 0 : i32
    return %c0_i32, %c0_i32_0 : i32, i32
  }
  func.func @transform_5(%arg0: i32) -> (i32, i32) {
    %c0_i32 = arith.constant 0 : i32
    %c0_i32_0 = arith.constant 0 : i32
    %c0_i32_1 = arith.constant 0 : i32
    return %c0_i32, %c0_i32_0 : i32, i32
  }
  func.func @transform_6(%arg0: i32) -> (i32, i32) {
    %c0_i32 = arith.constant 0 : i32
    %c0_i32_0 = arith.constant 0 : i32
    %c0_i32_1 = arith.constant 0 : i32
    return %c0_i32, %c0_i32_0 : i32, i32
  }
  func.func @transform_7(%arg0: i32) -> (i32, i32, i32) {
    %c0_i32 = arith.constant 0 : i32
    %c0_i32_0 = arith.constant 0 : i32
    %c0_i32_1 = arith.constant 0 : i32
    return %arg0, %c0_i32, %c0_i32_0 : i32, i32, i32
  }
}

</mosaic_0001>

<llo_original>
// kernel: joint_decoder_forward.1
$region0: #{joint_decoder_forward.1}
  #allocation0 [shape = 'u32[]', space=smem, size = 0x4, offset = 0x4, fixed_abs, tag = 'smem constant byte address 0x4 - core index']
  #allocation1 [shape = 'u32[144,128]{1,0:T(1,128)}', space=vmem, size = 0x12000, scoped, tag = 'internal scratch']
  #allocation2 [shape = 'f32[1,1]{1,0:T(1,128)S(1)}', space=vmem, size = 0x200, scoped, tag = 'scoped memory for joint_decoder_forward.1']
  %s0 = inlined_call_operand.vmem [shape: f32[8,128], index: 0, kind: input, shape index: {}]
  %s1 = inlined_call_operand.vmem [shape: f32[8,8], index: 1, kind: input, shape index: {}]
  %s2 = inlined_call_operand.vmem [shape: f32[1,128], index: 2, kind: input, shape index: {}]
  %s3 = inlined_call_operand.vmem [shape: f32[128,128], index: 3, kind: input, shape index: {}]
  %s4 = inlined_call_operand.vmem [shape: f32[1,128], index: 4, kind: input, shape index: {}]
  %s5 = inlined_call_operand.vmem [shape: f32[8,128], index: 5, kind: input, shape index: {}]
  %s6 = inlined_call_operand.<no memory space> [shape: f32[1,1], index: 6, kind: input, shape index: {}]
  %s7 = inlined_call_operand.vmem [shape: f32[1,1,64], index: 7, kind: output, shape index: {}]
  %s8 = sld [smem:[#allocation0]]
  $region38: #{joint_decoder_forward.1} parent=0
    _
  %s10 = ssub.s32 1, %s8
  %s11 = scalar_select 0, %s10, %s8
  %v12 = vstv %s6
  %13 = vst [vmem:[#allocation2] sm:$0x1] %v12
  // Predicated region
  $region2: #{joint_decoder_forward.1} parent=0 // pred_check
    _
  $region3: #{joint_decoder_forward.1} parent=0 // pred_check_branch
    %15 = sbr.rel (0) target = $region5
  $region4: #{joint_decoder_forward.1} parent=0 // pred_region
    _
  $region5: #{joint_decoder_forward.1} parent=0 // pred_fallthru
    _
  // Predicated region
  $region6: #{joint_decoder_forward.1} parent=0 // pred_check
    _
  $region7: #{joint_decoder_forward.1} parent=0 // pred_check_branch
    %17 = sbr.rel (0) target = $region9
  $region8: #{joint_decoder_forward.1} parent=0 // pred_region
    _
  $region9: #{joint_decoder_forward.1} parent=0 // pred_fallthru
    _
  // Predicated region
  $region10: #{joint_decoder_forward.1} parent=0 // pred_check
    _
  $region11: #{joint_decoder_forward.1} parent=0 // pred_check_branch
    %19 = sbr.rel (0) target = $region13
  $region12: #{joint_decoder_forward.1} parent=0 // pred_region
    _
  $region13: #{joint_decoder_forward.1} parent=0 // pred_fallthru
    _
  // Predicated region
  $region14: #{joint_decoder_forward.1} parent=0 // pred_check
    _
  $region15: #{joint_decoder_forward.1} parent=0 // pred_check_branch
    %21 = sbr.rel (0) target = $region17
  $region16: #{joint_decoder_forward.1} parent=0 // pred_region
    _
  $region17: #{joint_decoder_forward.1} parent=0 // pred_fallthru
    _
  // Predicated region
  $region18: #{joint_decoder_forward.1} parent=0 // pred_check
    _
  $region19: #{joint_decoder_forward.1} parent=0 // pred_check_branch
    %23 = sbr.rel (0) target = $region21
  $region20: #{joint_decoder_forward.1} parent=0 // pred_region
    _
  $region21: #{joint_decoder_forward.1} parent=0 // pred_fallthru
    _
  // Predicated region
  $region22: #{joint_decoder_forward.1} parent=0 // pred_check
    _
  $region23: #{joint_decoder_forward.1} parent=0 // pred_check_branch
    %25 = sbr.rel (0) target = $region25
  $region24: #{joint_decoder_forward.1} parent=0 // pred_region
    _
  $region25: #{joint_decoder_forward.1} parent=0 // pred_fallthru
    _
  // Predicated region
  $region26: #{joint_decoder_forward.1} parent=0 // pred_check
    _
  $region27: #{joint_decoder_forward.1} parent=0 // pred_check_branch
    %27 = sbr.rel (0) target = $region29
  $region28: #{joint_decoder_forward.1} parent=0 // pred_region
    _
  $region29: #{joint_decoder_forward.1} parent=0 // pred_fallthru
    _
  %v28 = vld [vmem:[%s2] sm:$0x1]
  %v29 = vld [vmem:[%s0] sm:$0xff]
  %v31 = vcombine.high %v29, %v29
  %v33 = vunpack.c.l.s4 1966171168
  %v34 = vunpack.c.0.s8 %v33
  %v35 = vlaneseq
  %v36 = vshrl.u32 %v35, 7
  %v37 = vsub.s32 %v34, %v36
  %v38 = vrot.slane %v29, %v37
  %v40 = vunpack.c.l.s4 1966171168
  %v41 = vunpack.c.0.s8 %v40
  %v42 = vlaneseq
  %v43 = vshrl.u32 %v42, 7
  %v44 = vsub.s32 %v41, %v43
  %v45 = vrot.slane %v31, %v44
  %v46 = vcombine.high %v38, %v38
  %v47 = vcombine.high %v45, %v45
  %v49 = vunpack.c.l.s4 1966171168
  %v50 = vunpack.c.0.s8 %v49
  %v51 = vlaneseq
  %v52 = vshrl.u32 %v51, 7
  %v53 = vsub.s32 %v50, %v52
  %v54 = vrot.slane %v38, %v53
  %v56 = vunpack.c.l.s4 1966171168
  %v57 = vunpack.c.0.s8 %v56
  %v58 = vlaneseq
  %v59 = vshrl.u32 %v58, 7
  %v60 = vsub.s32 %v57, %v59
  %v61 = vrot.slane %v45, %v60
  %v63 = vunpack.c.l.s4 1966171168
  %v64 = vunpack.c.0.s8 %v63
  %v65 = vlaneseq
  %v66 = vshrl.u32 %v65, 7
  %v67 = vsub.s32 %v64, %v66
  %v68 = vrot.slane %v46, %v67
  %v70 = vunpack.c.l.s4 1966171168
  %v71 = vunpack.c.0.s8 %v70
  %v72 = vlaneseq
  %v73 = vshrl.u32 %v72, 7
  %v74 = vsub.s32 %v71, %v73
  %v75 = vrot.slane %v47, %v74
  %v76 = vcombine.high %v54, %v54
  %v77 = vcombine.high %v61, %v61
  %v78 = vcombine.high %v68, %v68
  %v79 = vcombine.high %v75, %v75
  %v80 = vld [vmem:[%s1] sm:$0xff]
  %v81 = vlaneseq
  %v82 = vshrl.u32 %v81, 7
  %v83 = vsub.s32 0, %v82
  %v84 = vrot.slane %v80, %v83
  %86 = vbcast.lane.b32.xlu0 %v84, 256
  %v87 = vpop.permute.xlu0 %86
  %v88 = vlaneseq
  %v89 = vshrl.u32 %v88, 7
  %v90 = vsub.s32 1, %v89
  %v91 = vrot.slane %v80, %v90
  %93 = vbcast.lane.b32.xlu0 %v91, 256
  %v94 = vpop.permute.xlu0 %93
  %v95 = vlaneseq
  %v96 = vshrl.u32 %v95, 7
  %v97 = vsub.s32 2, %v96
  %v98 = vrot.slane %v80, %v97
  %100 = vbcast.lane.b32.xlu0 %v98, 256
  %v101 = vpop.permute.xlu0 %100
  %v102 = vlaneseq
  %v103 = vshrl.u32 %v102, 7
  %v104 = vsub.s32 3, %v103
  %v105 = vrot.slane %v80, %v104
  %107 = vbcast.lane.b32.xlu0 %v105, 256
  %v108 = vpop.permute.xlu0 %107
  %v109 = vlaneseq
  %v110 = vshrl.u32 %v109, 7
  %v111 = vsub.s32 4, %v110
  %v112 = vrot.slane %v80, %v111
  %114 = vbcast.lane.b32.xlu0 %v112, 256
  %v115 = vpop.permute.xlu0 %114
  %v116 = vlaneseq
  %v117 = vshrl.u32 %v116, 7
  %v118 = vsub.s32 5, %v117
  %v119 = vrot.slane %v80, %v118
  %121 = vbcast.lane.b32.xlu0 %v119, 256
  %v122 = vpop.permute.xlu0 %121
  %v123 = vlaneseq
  %v124 = vshrl.u32 %v123, 7
  %v125 = vsub.s32 6, %v124
  %v126 = vrot.slane %v80, %v125
  %128 = vbcast.lane.b32.xlu0 %v126, 256
  %v129 = vpop.permute.xlu0 %128
  %v130 = vlaneseq
  %v131 = vshrl.u32 %v130, 7
  %v132 = vsub.s32 7, %v131
  %v133 = vrot.slane %v80, %v132
  %135 = vbcast.lane.b32.xlu0 %v133, 256
  %v136 = vpop.permute.xlu0 %135
  %v138 = vlaneseq
  %v139 = vshrl.u32 %v138, 7
  %v140 = vsub.s32 0, %v139
  %v141 = vrot.slane %v28, %v140
  %v143 = vmul.f32 %v87, %v141
  %v144 = vmul.f32 %v94, %v141
  %v145 = vmul.f32 %v101, %v141
  %v146 = vmul.f32 %v108, %v141
  %v147 = vmul.f32 %v115, %v141
  %v148 = vmul.f32 %v122, %v141
  %v149 = vmul.f32 %v129, %v141
  %v150 = vmul.f32 %v136, %v141
  %v151 = vlaneseq
  %v152 = vshrl.u32 %v151, 7
  %v153 = vsub.s32 0, %v152
  %v154 = vrot.slane %v54, %v153
  %v155 = vlaneseq
  %v156 = vshrl.u32 %v155, 7
  %v157 = vsub.s32 0, %v156
  %v158 = vrot.slane %v68, %v157
  %v159 = vlaneseq
  %v160 = vshrl.u32 %v159, 7
  %v161 = vsub.s32 0, %v160
  %v162 = vrot.slane %v76, %v161
  %v163 = vlaneseq
  %v164 = vshrl.u32 %v163, 7
  %v165 = vsub.s32 0, %v164
  %v166 = vrot.slane %v78, %v165
  %v167 = vlaneseq
  %v168 = vshrl.u32 %v167, 7
  %v169 = vsub.s32 0, %v168
  %v170 = vrot.slane %v61, %v169
  %v171 = vlaneseq
  %v172 = vshrl.u32 %v171, 7
  %v173 = vsub.s32 0, %v172
  %v174 = vrot.slane %v75, %v173
  %v175 = vlaneseq
  %v176 = vshrl.u32 %v175, 7
  %v177 = vsub.s32 0, %v176
  %v178 = vrot.slane %v77, %v177
  %v179 = vlaneseq
  %v180 = vshrl.u32 %v179, 7
  %v181 = vsub.s32 0, %v180
  %v182 = vrot.slane %v79, %v181
  %v191 = vadd.f32 %v154, %v143
  %v192 = vadd.f32 %v158, %v144
  %v193 = vadd.f32 %v162, %v145
  %v194 = vadd.f32 %v166, %v146
  %v195 = vadd.f32 %v170, %v147
  %v196 = vadd.f32 %v174, %v148
  %v197 = vadd.f32 %v178, %v149
  %v198 = vadd.f32 %v182, %v150
  %v199 = vmax.f32 %v191, 0.0
  %v200 = vmax.f32 %v192, 0.0
  %v201 = vmax.f32 %v193, 0.0
  %v202 = vmax.f32 %v194, 0.0
  %v203 = vmax.f32 %v195, 0.0
  %v204 = vmax.f32 %v196, 0.0
  %v205 = vmax.f32 %v197, 0.0
  %v206 = vmax.f32 %v198, 0.0
  %v207 = vld [vmem:[%s3] sm:$0xff]
  %v208 = vld [vmem:[%s3 + $0x8] sm:$0xff]
  %v209 = vld [vmem:[%s3 + $0x10] sm:$0xff]
  %v210 = vld [vmem:[%s3 + $0x18] sm:$0xff]
  %v211 = vld [vmem:[%s3 + $0x20] sm:$0xff]
  %v212 = vld [vmem:[%s3 + $0x28] sm:$0xff]
  %v213 = vld [vmem:[%s3 + $0x30] sm:$0xff]
  %v214 = vld [vmem:[%s3 + $0x38] sm:$0xff]
  %v215 = vld [vmem:[%s3 + $0x40] sm:$0xff]
  %v216 = vld [vmem:[%s3 + $0x48] sm:$0xff]
  %v217 = vld [vmem:[%s3 + $0x50] sm:$0xff]
  %v218 = vld [vmem:[%s3 + $0x58] sm:$0xff]
  %v219 = vld [vmem:[%s3 + $0x60] sm:$0xff]
  %v220 = vld [vmem:[%s3 + $0x68] sm:$0xff]
  %v221 = vld [vmem:[%s3 + $0x70] sm:$0xff]
  %v222 = vld [vmem:[%s3 + $0x78] sm:$0xff]
  %v223 = vld [vmem:[%s4] sm:$0x1]
  %v225 = vlaneseq
  %v226 = vshrl.u32 %v225, 7
  %v227 = vsub.s32 0, %v226
  %v228 = vrot.slane %v223, %v227
  %230 = vmatprep.subr.mxu0 0.0
  %231 = vmatpush1.msra.mxu0 %v222
  %232 = vmatprep.subr.mxu0 0.0
  %233 = vmatpush1.msra.mxu0 %v221
  %234 = vmatprep.subr.mxu0 0.0
  %235 = vmatpush1.msra.mxu0 %v220
  %236 = vmatprep.subr.mxu0 0.0
  %237 = vmatpush1.msra.mxu0 %v219
  %238 = vmatprep.subr.mxu0 0.0
  %239 = vmatpush1.msra.mxu0 %v218
  %240 = vmatprep.subr.mxu0 0.0
  %241 = vmatpush1.msra.mxu0 %v217
  %242 = vmatprep.subr.mxu0 0.0
  %243 = vmatpush1.msra.mxu0 %v216
  %244 = vmatprep.subr.mxu0 0.0
  %245 = vmatpush1.msra.mxu0 %v215
  %246 = vmatprep.subr.mxu0 0.0
  %247 = vmatpush1.msra.mxu0 %v214
  %248 = vmatprep.subr.mxu0 0.0
  %249 = vmatpush1.msra.mxu0 %v213
  %250 = vmatprep.subr.mxu0 0.0
  %251 = vmatpush1.msra.mxu0 %v212
  %252 = vmatprep.subr.mxu0 0.0
  %253 = vmatpush1.msra.mxu0 %v211
  %254 = vmatprep.subr.mxu0 0.0
  %255 = vmatpush1.msra.mxu0 %v210
  %256 = vmatprep.subr.mxu0 0.0
  %257 = vmatpush1.msra.mxu0 %v209
  %258 = vmatprep.subr.mxu0 0.0
  %259 = vmatpush1.msra.mxu0 %v208
  %260 = vmatprep.subr.mxu0 0.0
  %261 = vmatpush1.msra.mxu0 %v207
  %262 = vmatprep.subr.mxu0 0.0
  %263 = vmatpush2.msra.mxu0 0.0
  %264 = vmatprep.subr.mxu0 0.0
  %265 = vmatpush2.msra.mxu0 0.0
  %266 = vmatprep.subr.mxu0 0.0
  %267 = vmatpush2.msra.mxu0 0.0
  %268 = vmatprep.subr.mxu0 0.0
  %269 = vmatpush2.msra.mxu0 0.0
  %270 = vmatprep.subr.mxu0 0.0
  %271 = vmatpush2.msra.mxu0 0.0
  %272 = vmatprep.subr.mxu0 0.0
  %273 = vmatpush2.msra.mxu0 0.0
  %274 = vmatprep.subr.mxu0 0.0
  %275 = vmatpush2.msra.mxu0 0.0
  %276 = vmatprep.subr.mxu0 0.0
  %277 = vmatpush2.msra.mxu0 0.0
  %278 = vmatprep.subr.mxu0 0.0
  %279 = vmatpush2.msra.mxu0 0.0
  %280 = vmatprep.subr.mxu0 0.0
  %281 = vmatpush2.msra.mxu0 0.0
  %282 = vmatprep.subr.mxu0 0.0
  %283 = vmatpush2.msra.mxu0 0.0
  %284 = vmatprep.subr.mxu0 0.0
  %285 = vmatpush2.msra.mxu0 0.0
  %286 = vmatprep.subr.mxu0 0.0
  %287 = vmatpush2.msra.mxu0 0.0
  %288 = vmatprep.subr.mxu0 0.0
  %289 = vmatpush2.msra.mxu0 0.0
  %290 = vmatprep.subr.mxu0 0.0
  %291 = vmatpush2.msra.mxu0 0.0
  %292 = vmatprep.subr.mxu0 0.0
  %293 = vmatpush2.msra.mxu0 0.0
  %294 = vmatprep.mubr.f32.mxu0 0.0
  %295 = vmatmul.mubr.f32.gmra.mxu0 %v199
  %v296 = vpop.f32.mrf.mxu0
  %v297 = vadd.f32 %v228, %v296
  %v298 = vpop.f32.mrf.mxu0
  %299 = vmatprep.mubr.f32.mxu0 0.0
  %300 = vmatmul.mubr.f32.gmra.mxu0 %v200
  %v301 = vpop.f32.mrf.mxu0
  %v302 = vadd.f32 %v228, %v301
  %v303 = vpop.f32.mrf.mxu0
  %304 = vmatprep.mubr.f32.mxu0 0.0
  %305 = vmatmul.mubr.f32.gmra.mxu0 %v201
  %v306 = vpop.f32.mrf.mxu0
  %v307 = vadd.f32 %v228, %v306
  %v308 = vpop.f32.mrf.mxu0
  %309 = vmatprep.mubr.f32.mxu0 0.0
  %310 = vmatmul.mubr.f32.gmra.mxu0 %v202
  %v311 = vpop.f32.mrf.mxu0
  %v312 = vadd.f32 %v228, %v311
  %v313 = vpop.f32.mrf.mxu0
  %314 = vmatprep.mubr.f32.mxu0 0.0
  %315 = vmatmul.mubr.f32.gmra.mxu0 %v203
  %v316 = vpop.f32.mrf.mxu0
  %v317 = vadd.f32 %v228, %v316
  %v318 = vpop.f32.mrf.mxu0
  %319 = vmatprep.mubr.f32.mxu0 0.0
  %320 = vmatmul.mubr.f32.gmra.mxu0 %v204
  %v321 = vpop.f32.mrf.mxu0
  %v322 = vadd.f32 %v228, %v321
  %v323 = vpop.f32.mrf.mxu0
  %324 = vmatprep.mubr.f32.mxu0 0.0
  %325 = vmatmul.mubr.f32.gmra.mxu0 %v205
  %v326 = vpop.f32.mrf.mxu0
  %v327 = vadd.f32 %v228, %v326
  %v328 = vpop.f32.mrf.mxu0
  %329 = vmatprep.mubr.f32.mxu0 0.0
  %330 = vmatmul.mubr.f32.gmra.mxu0 %v206
  %v331 = vpop.f32.mrf.mxu0
  %v332 = vadd.f32 %v228, %v331
  %v333 = vpop.f32.mrf.mxu0
  %334 = vdwg.mxu0
  %v335 = vmax.f32 %v297, 0.0
  %v336 = vmax.f32 %v302, 0.0
  %v337 = vmax.f32 %v307, 0.0
  %v338 = vmax.f32 %v312, 0.0
  %v339 = vmax.f32 %v317, 0.0
  %v340 = vmax.f32 %v322, 0.0
  %v341 = vmax.f32 %v327, 0.0
  %v342 = vmax.f32 %v332, 0.0
  %v343 = vld [vmem:[%s5] sm:$0xff]
  %344 = vmatprep.subr.mxu0 0.0
  %345 = vmatpush1.xpose.msra.mxu0 0.0
  %346 = vmatprep.subr.mxu0 0.0
  %347 = vmatpush1.xpose.msra.mxu0 0.0
  %348 = vmatprep.subr.mxu0 0.0
  %349 = vmatpush1.xpose.msra.mxu0 0.0
  %350 = vmatprep.subr.mxu0 0.0
  %351 = vmatpush1.xpose.msra.mxu0 0.0
  %352 = vmatprep.subr.mxu0 0.0
  %353 = vmatpush1.xpose.msra.mxu0 0.0
  %354 = vmatprep.subr.mxu0 0.0
  %355 = vmatpush1.xpose.msra.mxu0 0.0
  %356 = vmatprep.subr.mxu0 0.0
  %357 = vmatpush1.xpose.msra.mxu0 0.0
  %358 = vmatprep.subr.mxu0 0.0
  %359 = vmatpush1.xpose.msra.mxu0 0.0
  %360 = vmatprep.subr.mxu0 0.0
  %361 = vmatpush1.xpose.msra.mxu0 %v342
  %362 = vmatprep.subr.mxu0 0.0
  %363 = vmatpush1.xpose.msra.mxu0 %v341
  %364 = vmatprep.subr.mxu0 0.0
  %365 = vmatpush1.xpose.msra.mxu0 %v340
  %366 = vmatprep.subr.mxu0 0.0
  %367 = vmatpush1.xpose.msra.mxu0 %v339
  %368 = vmatprep.subr.mxu0 0.0
  %369 = vmatpush1.xpose.msra.mxu0 %v338
  %370 = vmatprep.subr.mxu0 0.0
  %371 = vmatpush1.xpose.msra.mxu0 %v337
  %372 = vmatprep.subr.mxu0 0.0
  %373 = vmatpush1.xpose.msra.mxu0 %v336
  %374 = vmatprep.subr.mxu0 0.0
  %375 = vmatpush1.xpose.msra.mxu0 %v335
  %376 = vmatprep.subr.mxu0 0.0
  %377 = vmatpush2.xpose.msra.mxu0 0.0
  %378 = vmatprep.subr.mxu0 0.0
  %379 = vmatpush2.xpose.msra.mxu0 0.0
  %380 = vmatprep.subr.mxu0 0.0
  %381 = vmatpush2.xpose.msra.mxu0 0.0
  %382 = vmatprep.subr.mxu0 0.0
  %383 = vmatpush2.xpose.msra.mxu0 0.0
  %384 = vmatprep.subr.mxu0 0.0
  %385 = vmatpush2.xpose.msra.mxu0 0.0
  %386 = vmatprep.subr.mxu0 0.0
  %387 = vmatpush2.xpose.msra.mxu0 0.0
  %388 = vmatprep.subr.mxu0 0.0
  %389 = vmatpush2.xpose.msra.mxu0 0.0
  %390 = vmatprep.subr.mxu0 0.0
  %391 = vmatpush2.xpose.msra.mxu0 0.0
  %392 = vmatprep.subr.mxu0 0.0
  %393 = vmatpush2.xpose.msra.mxu0 0.0
  %394 = vmatprep.subr.mxu0 0.0
  %395 = vmatpush2.xpose.msra.mxu0 0.0
  %396 = vmatprep.subr.mxu0 0.0
  %397 = vmatpush2.xpose.msra.mxu0 0.0
  %398 = vmatprep.subr.mxu0 0.0
  %399 = vmatpush2.xpose.msra.mxu0 0.0
  %400 = vmatprep.subr.mxu0 0.0
  %401 = vmatpush2.xpose.msra.mxu0 0.0
  %402 = vmatprep.subr.mxu0 0.0
  %403 = vmatpush2.xpose.msra.mxu0 0.0
  %404 = vmatprep.subr.mxu0 0.0
  %405 = vmatpush2.xpose.msra.mxu0 0.0
  %406 = vmatprep.subr.mxu0 0.0
  %407 = vmatpush2.xpose.msra.mxu0 0.0
  %408 = vmatprep.mubr.f32.mxu0 0.0
  %409 = vmatmul.mubr.f32.gmra.mxu0 %v343
  %v410 = vpop.f32.mrf.mxu0
  %v411 = vadd.f32 0.0, %v410
  %v412 = vpop.f32.mrf.mxu0
  %413 = vdwg.mxu0
  %v414 = vld [vmem:[#allocation2] sm:$0x1]
  %416 = vset.pattern.permute.xlu0 0
  %417 = vperm.xlu0 %416, %v414
  %v418 = vpop.permute.xlu0 %417
  %v420 = vlaneseq
  %v421 = vshrl.u32 %v420, 7
  %v422 = vsub.s32 0, %v421
  %v423 = vrot.slane %v418, %v422
  %v424 = vadd.f32 %v411, %v423
  %vm425 = vcmask 516096
  %426 = vst.msk [vmem:[%s7] sm:$0x1] %vm425, %v424
  // Predicated region
  $region30: #{joint_decoder_forward.1} parent=0 // pred_check
    _
  $region31: #{joint_decoder_forward.1} parent=0 // pred_check_branch
    %428 = sbr.rel (0) target = $region33
  $region32: #{joint_decoder_forward.1} parent=0 // pred_region
    _
  $region33: #{joint_decoder_forward.1} parent=0 // pred_fallthru
    _
  // Predicated region
  $region34: #{joint_decoder_forward.1} parent=0 // pred_check
    _
  $region35: #{joint_decoder_forward.1} parent=0 // pred_check_branch
    %430 = sbr.rel (0) target = $region37
  $region36: #{joint_decoder_forward.1} parent=0 // pred_region
    _
  $region37: #{joint_decoder_forward.1} parent=0 // pred_fallthru
    _

</llo_original>
